<compile_context>
chip_gen: v6e
topology: v6e:2x2x1
jax: 0.10.0
libtpu: 0.0.40
codegen_flags: <defaults>
</compile_context>

<pallas_src>
import jax
import jax.numpy as jnp
import numpy as np
from jax.experimental import pallas as pl
from jax.experimental.pallas import tpu as pltpu


def _patch_embed_kernel(patches_ref, w_ref, pos_ref, out_ref):
    # patches_ref: (TM, K) bf16   w_ref: (K, D) bf16   pos_ref: (TM, D) f32   out_ref: (TM, D)
    acc = jnp.dot(patches_ref[...], w_ref[...], preferred_element_type=jnp.float32)
    out_ref[...] = (acc + pos_ref[...]).astype(out_ref.dtype)


def blip2_vision_embeddings(pixel_values, weight, bias, class_embedding,
                            position_embedding, patch_size, frame_stride,
                            *, tm=256, compute_dtype=jnp.bfloat16):
    B, C, T, H, W = pixel_values.shape
    D = weight.shape[0]
    p, fs = patch_size, frame_stride
    Tq, Hq, Wq = T // fs, H // p, W // p
    P = Tq * Hq * Wq                 # num_patches
    K = C * fs * p * p               # flattened conv-window size
    S = P + 1                        # output sequence length (cls token + patches)
    out_dtype = weight.dtype         # PyTorch: target_dtype = patch_embedding.weight.dtype

    # ---- im2col patch extraction (XLA glue), cast to the MXU compute dtype (bf16). ----
    # Inner ordering (c, dt, dh, dw) matches the OIDHW weight flattening -> exact Conv3d contraction.
    x = pixel_values.astype(compute_dtype).reshape(B, C, Tq, fs, Hq, p, Wq, p)
    x = jnp.transpose(x, (0, 2, 4, 6, 1, 3, 5, 7))            # (B, Tq, Hq, Wq, C, fs, p, p)
    patches = x.reshape(B, P, K)
    # Prepend one all-zero "patch": zeros @ W == 0, and pos_full[0] below carries the class token,
    # so row 0 of the kernel output becomes class_embedding + position_embedding[0].
    patches = jnp.pad(patches, ((0, 0), (1, 0), (0, 0)))      # (B, S, K), fuses into the same copy
    # TODO(synk): fuse patch extraction into the kernel (pixel_values via memory_space=pl.ANY +
    # manual window DMAs) to remove this extra HBM pass over the input.

    w_flat = weight.reshape(D, K).T.astype(compute_dtype)     # (K, D), MXU-ready

    # ---- fused additive table: conv bias folded in, class-token row pre-baked (f32). ----
    pos = position_embedding.astype(jnp.float32)[0, :S, :]    # (S, D)
    cls = class_embedding.astype(jnp.float32).reshape(1, D)
    pos_full = jnp.concatenate(
        [pos[0:1] + cls, pos[1:] + bias.astype(jnp.float32)[None, :]], axis=0)   # (S, D)

    # ---- Pallas call: grid over (sequence tiles, batch) -- batch innermost so the weight and the
    # pos/bias tile keep a constant block index across the inner loop (no redundant re-fetch). ----
    tm = min(tm, ((S + 7) // 8) * 8)            # don't over-tile tiny configs; keep sublane-aligned
    num_tiles = pl.cdiv(S, tm)

    out = pl.pallas_call(
        _patch_embed_kernel,
        out_shape=jax.ShapeDtypeStruct((B, S, D), out_dtype),
        grid=(num_tiles, B),
        in_specs=[
            pl.BlockSpec((pl.Squeezed(), tm, K), lambda j, b: (b, j, 0)),   # patch tile (streams)
            pl.BlockSpec((K, D), lambda j, b: (0, 0)),                      # conv weight (resident)
            pl.BlockSpec((tm, D), lambda j, b: (j, 0)),                     # pos+bias (per-tile only)
        ],
        out_specs=pl.BlockSpec((pl.Squeezed(), tm, D), lambda j, b: (b, j, 0)),
        compiler_params=pltpu.CompilerParams(
            dimension_semantics=("parallel", "parallel"),
            vmem_limit_bytes=32 * 1024 * 1024),
    )(patches, w_flat, pos_full)

    return out                                                 # (B, P + 1, D)


if __name__ == "__main__":
    # Small config consistent with the module:
    # hidden_size=32, image_size=16, patch_size=8, num_frames=8, frame_stride=2
    B = 2
    embed_dim = 32
    image_size = 16
    patch_size = 8
    num_frames = 8
    frame_stride = 2
    num_patches = (num_frames // frame_stride) * (image_size // patch_size) ** 2  # 16

    key = jax.random.PRNGKey(0)
    k1, k2, k3, k4, k5 = jax.random.split(key, 5)

    pixel_values = jax.random.normal(
        k1, (B, 3, num_frames, image_size, image_size), jnp.float32)
    weight = jax.random.normal(
        k2, (embed_dim, 3, frame_stride, patch_size, patch_size), jnp.float32) * 0.02
    bias = jax.random.normal(k3, (embed_dim,), jnp.float32) * 0.02
    class_embedding = jax.random.normal(k4, (1, 1, embed_dim), jnp.float32)
    position_embedding = jax.random.normal(k5, (1, num_patches + 1, embed_dim), jnp.float32)

    out = blip2_vision_embeddings(pixel_values, weight, bias, class_embedding,
                                  position_embedding, patch_size, frame_stride)
    out = jax.block_until_ready(out)

    # Reference: true Conv3d with the same bf16 input/weight rounding + f32 accumulation that the
    # kernel uses, followed by the PyTorch forward glue (cls concat + position embedding add).
    conv = jax.lax.conv_general_dilated(
        pixel_values.astype(jnp.bfloat16), weight.astype(jnp.bfloat16),
        window_strides=(frame_stride, patch_size, patch_size),
        padding="VALID",
        dimension_numbers=("NCDHW", "OIDHW", "NCDHW"),
        preferred_element_type=jnp.float32)
    conv = conv + bias.reshape(1, embed_dim, 1, 1, 1)
    ref_patch = conv.reshape(B, embed_dim, num_patches).transpose(0, 2, 1)
    ref_cls = jnp.broadcast_to(class_embedding, (B, 1, embed_dim))
    ref = jnp.concatenate([ref_cls, ref_patch], axis=1) \
        + position_embedding[:, :num_patches + 1, :]

    assert out.shape == (B, num_patches + 1, embed_dim)
    np.testing.assert_allclose(np.asarray(out, dtype=np.float32),
                               np.asarray(ref, dtype=np.float32),
                               rtol=2e-2, atol=2e-2)
    print("KERNEL_OK")
</pallas_src>

<mosaic_0001>
module attributes {stable_mosaic.version = 11 : i64} {
  func.func @_patch_embed_kernel(%arg0: i32, %arg1: i32, %arg2: memref<1x24x384xbf16, #tpu.memory_space<vmem>>, %arg3: memref<384x32xbf16, #tpu.memory_space<vmem>>, %arg4: memref<24x32xf32, #tpu.memory_space<vmem>>, %arg5: memref<1x24x32xf32, #tpu.memory_space<vmem>>) attributes {dimension_semantics = [#tpu.dimension_semantics<parallel>, #tpu.dimension_semantics<parallel>], iteration_bounds = array<i64: 1, 2>, scalar_prefetch = 0 : i64, scratch_operands = 0 : i64, tpu.core_type = #tpu.core_type<tc>, window_params = [{transform_indices = @transform_0, window_bounds = array<i64: 1, 24, 384>}, {pipeline_mode = #tpu.pipeline_mode<synchronous>, transform_indices = @transform_1, window_bounds = array<i64: 384, 32>}, {transform_indices = @transform_2, window_bounds = array<i64: 24, 32>}, {transform_indices = @transform_3, window_bounds = array<i64: 1, 24, 32>}]} {
    %c0 = arith.constant 0 : index
    %c0_0 = arith.constant 0 : index
    %c0_1 = arith.constant 0 : index
    %0 = vector.load %arg2[%c0, %c0_0, %c0_1] : memref<1x24x384xbf16, #tpu.memory_space<vmem>>, vector<1x24x384xbf16>
    %1 = vector.shape_cast %0 : vector<1x24x384xbf16> to vector<24x384xbf16>
    %c0_2 = arith.constant 0 : index
    %c0_3 = arith.constant 0 : index
    %2 = vector.load %arg3[%c0_2, %c0_3] : memref<384x32xbf16, #tpu.memory_space<vmem>>, vector<384x32xbf16>
    %cst = arith.constant dense<0.000000e+00> : vector<24x32xf32>
    %3 = tpu.matmul %1, %2, %cst {dimension_numbers = #tpu.dot_dimension_numbers<[1], [0], [0], [1], [0, 0, 1, 1], [], []>} : vector<24x384xbf16>, vector<384x32xbf16>, vector<24x32xf32> -> vector<24x32xf32>
    %c0_4 = arith.constant 0 : index
    %c0_5 = arith.constant 0 : index
    %4 = vector.load %arg4[%c0_4, %c0_5] : memref<24x32xf32, #tpu.memory_space<vmem>>, vector<24x32xf32>
    %5 = arith.addf %3, %4 : vector<24x32xf32>
    %c0_6 = arith.constant 0 : index
    %c0_7 = arith.constant 0 : index
    %c0_8 = arith.constant 0 : index
    %6 = vector.load %arg5[%c0_6, %c0_7, %c0_8] : memref<1x24x32xf32, #tpu.memory_space<vmem>>, vector<1x24x32xf32>
    %7 = vector.shape_cast %6 : vector<1x24x32xf32> to vector<24x32xf32>
    %8 = vector.shape_cast %5 : vector<24x32xf32> to vector<1x24x32xf32>
    tpu.vector_store %arg5[%c0_6, %c0_7, %c0_8], %8 {strides = array<i32>} : memref<1x24x32xf32, #tpu.memory_space<vmem>>, vector<1x24x32xf32>,
    return
  }
  func.func @transform_0(%arg0: i32, %arg1: i32) -> (i32, i32, i32) {
    %c0_i32 = arith.constant 0 : i32
    %c0_i32_0 = arith.constant 0 : i32
    return %arg1, %arg0, %c0_i32 : i32, i32, i32
  }
  func.func @transform_1(%arg0: i32, %arg1: i32) -> (i32, i32) {
    %c0_i32 = arith.constant 0 : i32
    %c0_i32_0 = arith.constant 0 : i32
    %c0_i32_1 = arith.constant 0 : i32
    return %c0_i32, %c0_i32_0 : i32, i32
  }
  func.func @transform_2(%arg0: i32, %arg1: i32) -> (i32, i32) {
    %c0_i32 = arith.constant 0 : i32
    %c0_i32_0 = arith.constant 0 : i32
    return %arg0, %c0_i32 : i32, i32
  }
  func.func @transform_3(%arg0: i32, %arg1: i32) -> (i32, i32, i32) {
    %c0_i32 = arith.constant 0 : i32
    %c0_i32_0 = arith.constant 0 : i32
    return %arg1, %arg0, %c0_i32 : i32, i32, i32
  }
}

</mosaic_0001>

<llo_original>
// kernel: tpu_custom_call.1
$region0: #{tpu_custom_call.1}
  #allocation0 [shape = 'u32[]', space=smem, size = 0x4, offset = 0x4, fixed_abs, tag = 'smem constant byte address 0x4 - core index']
  #allocation1 [shape = 'u32[144,128]{1,0:T(1,128)}', space=vmem, size = 0x12000, scoped, tag = 'internal scratch']
  %s0 = inlined_call_operand.vmem [shape: bf16[2,17,384], index: 0, kind: input, shape index: {}]
  %s1 = inlined_call_operand.vmem [shape: bf16[384,32], index: 1, kind: input, shape index: {}]
  %s2 = inlined_call_operand.vmem [shape: f32[17,32], index: 2, kind: input, shape index: {}]
  %s3 = inlined_call_operand.vmem [shape: f32[2,17,32], index: 3, kind: output, shape index: {}]
  %s4 = sld [smem:[#allocation0]]
  $region45: #{tpu_custom_call.1} parent=0
    _
  %s6 = ssub.s32 1, %s4
  %s7 = scalar_select 0, %s6, %s4
  loop: start=0, step=1, limit=4
  $region2: #{tpu_custom_call.1} parent=0 // loop_pre_header
    _
  $region3: #{tpu_custom_call.1} parent=0 // loop_header
    %s9 = sphi 0, %s13
    %p10 = scmp.ge.s32.totalorder %s9, 4
    %s16 = sphi 0, %s28
    %s17 = sphi 0, %s24
    %s18 = sphi 0, %s16
    %s19 = sphi 0, %s17
    %s20 = sphi 0, %s18
    %s21 = sphi 0, %s19
    %s33 = sphi 0, %s35
    %s36 = sphi 0, %s33
    %s37 = sphi 0, %s36
    %s53 = sphi 0, %s37
    %s57 = sphi 0, %s57
    %s59 = sphi 0, %s57
    %s60 = sphi 0, %s59
    %s74 = sphi 0, %s60
    %s80 = sphi 0, %s82
    %s83 = sphi 0, %s80
    %s84 = sphi 0, %s83
    %s100 = sphi 0, %s84
    %s108 = sphi 0, %s110
    %s111 = sphi 0, %s108
    %s112 = sphi 0, %s111
    %s128 = sphi 0, %s112
  $region4: #{tpu_custom_call.1} parent=0 // loop_header_branch
    %12 = sbr.rel (%p10) target = $region8
  $region5: #{tpu_custom_call.1} parent=0 // loop_body
    %s14 = ssub.s32 %s9, 1
    %s15 = ssub.s32 %s9, 2
    %s22 = sadd.s32 1, %s17
    %p23 = scmp.ge.s32.totalorder %s22, 2
    %s24 = scalar_select %p23, 0, %s22
    %s25 = sadd.s32 1, %s16
    %s26 = scalar_select %p23, %s25, %s16
    %p27 = scmp.ge.s32.totalorder %s26, 1
    %s28 = scalar_select %p27, 0, %s26
    %s29 = ssub.s32 %s17, %s24
    %s30 = ssub.s32 %s16, %s28
    %s31 = sor.u32 %s29, %s30
    %p32 = scmp.eq.s32.totalorder %s31, 0
    %s34 = sadd.s32 %s33, 1
    %s35 = scalar_select %p32, %s33, %s34
    %p38 = pneg %p32
    %p39 = scmp.eq.s32.totalorder %s9, 1
    %p40 = por %p38, %p39
    %p41 = scmp.ne.s32.totalorder %s33, %s36
    %p42 = scmp.eq.s32.totalorder %s9, 0
    %p43 = por %p41, %p42
    %p44 = scmp.ne.s32.totalorder %s33, %s36
    %p45 = scmp.eq.s32.totalorder %s14, 1
    %p46 = por %p44, %p45
    %p47 = scmp.ne.s32.totalorder %s36, %s37
    %p48 = scmp.eq.s32.totalorder %s14, 0
    %p49 = por %p47, %p48
    %p50 = scmp.ne.s32.totalorder %s36, %s37
    %p51 = scmp.eq.s32.totalorder %s15, 1
    %p52 = por %p50, %p51
    %p54 = scmp.ne.s32.totalorder %s37, %s53
    %p55 = scmp.eq.s32.totalorder %s15, 0
    %p56 = por %p54, %p55
    %s58 = sadd.s32 %s57, 1
    %p61 = scmp.eq.s32.totalorder %s9, 1
    %p62 = scmp.ne.s32.totalorder %s57, %s59
    %p63 = scmp.eq.s32.totalorder %s9, 0
    %p64 = por %p62, %p63
    %p65 = scmp.ne.s32.totalorder %s57, %s59
    %p66 = scmp.eq.s32.totalorder %s14, 1
    %p67 = por %p65, %p66
    %p68 = scmp.ne.s32.totalorder %s59, %s60
    %p69 = scmp.eq.s32.totalorder %s14, 0
    %p70 = por %p68, %p69
    %p71 = scmp.ne.s32.totalorder %s59, %s60
    %p72 = scmp.eq.s32.totalorder %s15, 1
    %p73 = por %p71, %p72
    %p75 = scmp.ne.s32.totalorder %s60, %s74
    %p76 = scmp.eq.s32.totalorder %s15, 0
    %p77 = por %p75, %p76
    %s78 = ssub.s32 %s16, %s28
    %p79 = scmp.eq.s32.totalorder %s78, 0
    %s81 = sadd.s32 %s80, 1
    %s82 = scalar_select %p79, %s80, %s81
    %p85 = pneg %p79
    %p86 = scmp.eq.s32.totalorder %s9, 1
    %p87 = por %p85, %p86
    %p88 = scmp.ne.s32.totalorder %s80, %s83
    %p89 = scmp.eq.s32.totalorder %s9, 0
    %p90 = por %p88, %p89
    %p91 = scmp.ne.s32.totalorder %s80, %s83
    %p92 = scmp.eq.s32.totalorder %s14, 1
    %p93 = por %p91, %p92
    %p94 = scmp.ne.s32.totalorder %s83, %s84
    %p95 = scmp.eq.s32.totalorder %s14, 0
    %p96 = por %p94, %p95
    %p97 = scmp.ne.s32.totalorder %s83, %s84
    %p98 = scmp.eq.s32.totalorder %s15, 1
    %p99 = por %p97, %p98
    %p101 = scmp.ne.s32.totalorder %s84, %s100
    %p102 = scmp.eq.s32.totalorder %s15, 0
    %p103 = por %p101, %p102
    %s104 = ssub.s32 %s17, %s24
    %s105 = ssub.s32 %s16, %s28
    %s106 = sor.u32 %s104, %s105
    %p107 = scmp.eq.s32.totalorder %s106, 0
    %s109 = sadd.s32 %s108, 1
    %s110 = scalar_select %p107, %s108, %s109
    %p113 = pneg %p107
    %p114 = scmp.eq.s32.totalorder %s9, 1
    %p115 = por %p113, %p114
    %p116 = scmp.ne.s32.totalorder %s108, %s111
    %p117 = scmp.eq.s32.totalorder %s9, 0
    %p118 = por %p116, %p117
    %p119 = scmp.ne.s32.totalorder %s108, %s111
    %p120 = scmp.eq.s32.totalorder %s14, 1
    %p121 = por %p119, %p120
    %p122 = scmp.ne.s32.totalorder %s111, %s112
    %p123 = scmp.eq.s32.totalorder %s14, 0
    %p124 = por %p122, %p123
    %p125 = scmp.ne.s32.totalorder %s111, %s112
    %p126 = scmp.eq.s32.totalorder %s15, 1
    %p127 = por %p125, %p126
    %p129 = scmp.ne.s32.totalorder %s112, %s128
    %p130 = scmp.eq.s32.totalorder %s15, 0
    %p131 = por %p129, %p130
    %p132 = scmp.le.s32.totalorder 1, %s9
    %p133 = scmp.lt.s32.totalorder %s9, 3
    %p134 = pnand %p132, %p133
    %p135 = pneg %p134
    // Predicated region
    $region9: #{tpu_custom_call.1} parent=5 // pred_check
      _
    $region10: #{tpu_custom_call.1} parent=5 // pred_check_branch
      %137 = sbr.rel (%p134) target = $region12
    $region11: #{tpu_custom_call.1} parent=5 // pred_region
      %s138 = ssub.s32 %s9, 1
      // Predicated region
      $region13: #{tpu_custom_call.1} parent=11 // pred_check
        %p139 = pneg %p70
      $region14: #{tpu_custom_call.1} parent=11 // pred_check_branch
        %141 = sbr.rel (%p139) target = $region16
      $region15: #{tpu_custom_call.1} parent=11 // pred_region
        _
      $region16: #{tpu_custom_call.1} parent=11 // pred_fallthru
        _
      // Predicated region
      $region17: #{tpu_custom_call.1} parent=11 // pred_check
        %p142 = pneg %p96
      $region18: #{tpu_custom_call.1} parent=11 // pred_check_branch
        %144 = sbr.rel (%p142) target = $region20
      $region19: #{tpu_custom_call.1} parent=11 // pred_region
        %s145 = smul.u32 3, %s18
        %p146 = scmp.lt.s32.totalorder %s145, 2
        %s147 = scalar_select %p146, %s145, 2
        %s148 = smul.addr %s147, 8
        %s149 = scalar_lea.vmem %s2, %s148
        %s150 = smul.u32 3, %s18
      $region20: #{tpu_custom_call.1} parent=11 // pred_fallthru
        _
    $region12: #{tpu_custom_call.1} parent=5 // pred_fallthru
      _
    %p151 = scmp.lt.s32.totalorder %s9, 2
    // Predicated region
    $region21: #{tpu_custom_call.1} parent=5 // pred_check
      %p152 = pneg %p151
    $region22: #{tpu_custom_call.1} parent=5 // pred_check_branch
      %154 = sbr.rel (%p152) target = $region24
    $region23: #{tpu_custom_call.1} parent=5 // pred_region
      // Predicated region
      $region25: #{tpu_custom_call.1} parent=23 // pred_check
        %p155 = pneg %p43
      $region26: #{tpu_custom_call.1} parent=23 // pred_check_branch
        %157 = sbr.rel (%p155) target = $region28
      $region27: #{tpu_custom_call.1} parent=23 // pred_region
        %s158 = smul.u32 3, %s16
        %p159 = scmp.lt.s32.totalorder %s17, 1
        %s160 = scalar_select %p159, %s17, 1
        %p161 = scmp.lt.s32.totalorder %s158, 2
        %s162 = scalar_select %p161, %s158, 2
        %s163 = smul.addr %s162, 3
        %s164 = smul.addr %s160, 9
        %s165 = sadd.s32 %s163, %s164
        %s166 = smul.addr %s165, 4
        %s167 = scalar_lea.vmem %s0, %s166
        %s168 = smul.u32 3, %s16
      $region28: #{tpu_custom_call.1} parent=23 // pred_fallthru
        _
    $region24: #{tpu_custom_call.1} parent=5 // pred_fallthru
      _
    %p169 = scmp.le.s32.totalorder 1, %s9
    %p170 = scmp.lt.s32.totalorder %s9, 3
    %p171 = pnand %p169, %p170
    %p172 = pneg %p171
    // Predicated region
    $region29: #{tpu_custom_call.1} parent=5 // pred_check
      _
    $region30: #{tpu_custom_call.1} parent=5 // pred_check_branch
      %174 = sbr.rel (%p171) target = $region32
    $region31: #{tpu_custom_call.1} parent=5 // pred_region
      %s175 = ssub.s32 %s9, 1
      %s176 = smul.u32 3, %s18
      %p177 = scmp.lt.s32.totalorder %s19, 1
      %s178 = scalar_select %p177, %s19, 1
      %p179 = scmp.lt.s32.totalorder %s176, 2
      %s180 = scalar_select %p179, %s176, 2
      %s181 = smul.addr %s180, 3
      %s182 = smul.addr %s178, 9
      %s183 = sadd.s32 %s181, %s182
      %s184 = smul.addr %s183, 4
      %s185 = scalar_lea.vmem %s0, %s184
      %p186 = pneg %p49
      %p187 = pneg %p46
      %p188 = pneg %p70
      %p189 = pneg %p67
      %s190 = smul.u32 3, %s18
      %p191 = scmp.lt.s32.totalorder %s190, 2
      %s192 = scalar_select %p191, %s190, 2
      %s193 = smul.addr %s192, 8
      %s194 = scalar_lea.vmem %s2, %s193
      %p195 = pneg %p96
      %p196 = pneg %p93
      %p197 = pneg %p124
      %p198 = pneg %p121
      %s199 = smul.u32 3, %s18
      %p200 = scmp.lt.s32.totalorder %s19, 1
      %s201 = scalar_select %p200, %s19, 1
      %p202 = scmp.lt.s32.totalorder %s199, 2
      %s203 = scalar_select %p202, %s199, 2
      %s204 = smul.addr %s201, 3
      %s205 = sadd.s32 %s203, %s204
      %s206 = smul.addr %s205, 8
      %s207 = scalar_lea.vmem %s3, %s206
      %s208 = smul.u32 3, %s18
      %p209 = scmp.lt.s32.totalorder %s19, 1
      %s210 = scalar_select %p209, %s19, 1
      %p211 = scmp.lt.s32.totalorder %s208, 2
      %s212 = scalar_select %p211, %s208, 2
      %s213 = smul.addr %s212, 3
      %s214 = smul.addr %s210, 9
      %s215 = sadd.s32 %s213, %s214
      %s216 = smul.addr %s215, 4
      %s217 = scalar_lea.vmem %s0, %s216
      %s218 = smul.u32 3, %s18
      %s219 = smul.u32 3, %s18
      %p220 = scmp.lt.s32.totalorder %s219, 2
      %s221 = scalar_select %p220, %s219, 2
      %s222 = smul.addr %s221, 8
      %s223 = scalar_lea.vmem %s2, %s222
      %s224 = smul.u32 3, %s18
      %s225 = smul.u32 3, %s18
      %p226 = scmp.lt.s32.totalorder %s19, 1
      %s227 = scalar_select %p226, %s19, 1
      %p228 = scmp.lt.s32.totalorder %s225, 2
      %s229 = scalar_select %p228, %s225, 2
      %s230 = smul.addr %s227, 3
      %s231 = sadd.s32 %s229, %s230
      %s232 = smul.addr %s231, 8
      %s233 = scalar_lea.vmem %s3, %s232
      %s234 = smul.u32 3, %s18
      %v236 = vld [vmem:[%s217] sm:$0xff]
      %v237 = vld [vmem:[%s217 + $0x8] sm:$0xf]
      %v238 = vld [vmem:[%s217 + $0xc] sm:$0xff]
      %v239 = vld [vmem:[%s217 + $0x14] sm:$0xf]
      %v240 = vld [vmem:[%s217 + $0x18] sm:$0xff]
      %v241 = vld [vmem:[%s217 + $0x20] sm:$0xf]
      %v242 = vld [vmem:[%s1] sm:$0xf]
      %v243 = vld [vmem:[%s1 + $0x4] sm:$0xf]
      %v244 = vld [vmem:[%s1 + $0x8] sm:$0xf]
      %v245 = vld [vmem:[%s1 + $0xc] sm:$0xf]
      %v246 = vld [vmem:[%s1 + $0x10] sm:$0xf]
      %v247 = vld [vmem:[%s1 + $0x14] sm:$0xf]
      %v248 = vld [vmem:[%s1 + $0x18] sm:$0xf]
      %v249 = vld [vmem:[%s1 + $0x1c] sm:$0xf]
      %v250 = vld [vmem:[%s1 + $0x20] sm:$0xf]
      %v251 = vld [vmem:[%s1 + $0x24] sm:$0xf]
      %v252 = vld [vmem:[%s1 + $0x28] sm:$0xf]
      %v253 = vld [vmem:[%s1 + $0x2c] sm:$0xf]
      %v254 = vld [vmem:[%s1 + $0x30] sm:$0xf]
      %v255 = vld [vmem:[%s1 + $0x34] sm:$0xf]
      %v256 = vld [vmem:[%s1 + $0x38] sm:$0xf]
      %v257 = vld [vmem:[%s1 + $0x3c] sm:$0xf]
      %v258 = vld [vmem:[%s1 + $0x40] sm:$0xf]
      %v259 = vld [vmem:[%s1 + $0x44] sm:$0xf]
      %v260 = vld [vmem:[%s1 + $0x48] sm:$0xf]
      %v261 = vld [vmem:[%s1 + $0x4c] sm:$0xf]
      %v262 = vld [vmem:[%s1 + $0x50] sm:$0xf]
      %v263 = vld [vmem:[%s1 + $0x54] sm:$0xf]
      %v264 = vld [vmem:[%s1 + $0x58] sm:$0xf]
      %v265 = vld [vmem:[%s1 + $0x5c] sm:$0xf]
      %v266 = vld [vmem:[%s1 + $0x60] sm:$0xf]
      %v267 = vld [vmem:[%s1 + $0x64] sm:$0xf]
      %v268 = vld [vmem:[%s1 + $0x68] sm:$0xf]
      %v269 = vld [vmem:[%s1 + $0x6c] sm:$0xf]
      %v270 = vld [vmem:[%s1 + $0x70] sm:$0xf]
      %v271 = vld [vmem:[%s1 + $0x74] sm:$0xf]
      %v272 = vld [vmem:[%s1 + $0x78] sm:$0xf]
      %v273 = vld [vmem:[%s1 + $0x7c] sm:$0xf]
      %v274 = vld [vmem:[%s1 + $0x80] sm:$0xf]
      %v275 = vld [vmem:[%s1 + $0x84] sm:$0xf]
      %v276 = vld [vmem:[%s1 + $0x88] sm:$0xf]
      %v277 = vld [vmem:[%s1 + $0x8c] sm:$0xf]
      %v278 = vld [vmem:[%s1 + $0x90] sm:$0xf]
      %v279 = vld [vmem:[%s1 + $0x94] sm:$0xf]
      %v280 = vld [vmem:[%s1 + $0x98] sm:$0xf]
      %v281 = vld [vmem:[%s1 + $0x9c] sm:$0xf]
      %v282 = vld [vmem:[%s1 + $0xa0] sm:$0xf]
      %v283 = vld [vmem:[%s1 + $0xa4] sm:$0xf]
      %v284 = vld [vmem:[%s1 + $0xa8] sm:$0xf]
      %v285 = vld [vmem:[%s1 + $0xac] sm:$0xf]
      %v286 = vld [vmem:[%s1 + $0xb0] sm:$0xf]
      %v287 = vld [vmem:[%s1 + $0xb4] sm:$0xf]
      %v288 = vld [vmem:[%s1 + $0xb8] sm:$0xf]
      %v289 = vld [vmem:[%s1 + $0xbc] sm:$0xf]
      %v290 = vld [vmem:[%s223] sm:$0xff]
      %v291 = vld [vmem:[%s223 + $0x8] sm:$0xff]
      %v292 = vld [vmem:[%s223 + $0x10] sm:$0xff]
      %v299 = vunpack.c.l.b16 %v236
      %v300 = vunpack.c.h.b16 %v236
      %v301 = vunpack.c.l.b16 %v237
      %v302 = vunpack.c.l.b16 %v238
      %v303 = vunpack.c.h.b16 %v238
      %v304 = vunpack.c.l.b16 %v239
      %v305 = vunpack.c.l.b16 %v240
      %v306 = vunpack.c.h.b16 %v240
      %v307 = vunpack.c.l.b16 %v241
      %v308 = vpack.c.b16 %v302, %v299
      %v309 = vpack.c.b16 %v303, %v300
      %v310 = vpack.c.b16 %v304, %v301
      %v311 = vpack.c.b16 %v305, %v305
      %v312 = vpack.c.b16 %v306, %v306
      %v313 = vpack.c.b16 %v307, %v307
      %v368 = vunpack.c.l.b16 %v242
      %v369 = vunpack.c.l.b16 %v243
      %v370 = vunpack.c.l.b16 %v244
      %v371 = vunpack.c.l.b16 %v245
      %v372 = vunpack.c.l.b16 %v246
      %v373 = vunpack.c.l.b16 %v247
      %v374 = vunpack.c.l.b16 %v248
      %v375 = vunpack.c.l.b16 %v249
      %v376 = vunpack.c.l.b16 %v250
      %v377 = vunpack.c.l.b16 %v251
      %v378 = vunpack.c.l.b16 %v252
      %v379 = vunpack.c.l.b16 %v253
      %v380 = vunpack.c.l.b16 %v254
      %v381 = vunpack.c.l.b16 %v255
      %v382 = vunpack.c.l.b16 %v256
      %v383 = vunpack.c.l.b16 %v257
      %v384 = vunpack.c.l.b16 %v258
      %v385 = vunpack.c.l.b16 %v259
      %v386 = vunpack.c.l.b16 %v260
      %v387 = vunpack.c.l.b16 %v261
      %v388 = vunpack.c.l.b16 %v262
      %v389 = vunpack.c.l.b16 %v263
      %v390 = vunpack.c.l.b16 %v264
      %v391 = vunpack.c.l.b16 %v265
      %v392 = vunpack.c.l.b16 %v266
      %v393 = vunpack.c.l.b16 %v267
      %v394 = vunpack.c.l.b16 %v268
      %v395 = vunpack.c.l.b16 %v269
      %v396 = vunpack.c.l.b16 %v270
      %v397 = vunpack.c.l.b16 %v271
      %v398 = vunpack.c.l.b16 %v272
      %v399 = vunpack.c.l.b16 %v273
      %v400 = vunpack.c.l.b16 %v274
      %v401 = vunpack.c.l.b16 %v275
      %v402 = vunpack.c.l.b16 %v276
      %v403 = vunpack.c.l.b16 %v277
      %v404 = vunpack.c.l.b16 %v278
      %v405 = vunpack.c.l.b16 %v279
      %v406 = vunpack.c.l.b16 %v280
      %v407 = vunpack.c.l.b16 %v281
      %v408 = vunpack.c.l.b16 %v282
      %v409 = vunpack.c.l.b16 %v283
      %v410 = vunpack.c.l.b16 %v284
      %v411 = vunpack.c.l.b16 %v285
      %v412 = vunpack.c.l.b16 %v286
      %v413 = vunpack.c.l.b16 %v287
      %v414 = vunpack.c.l.b16 %v288
      %v415 = vunpack.c.l.b16 %v289
      %v416 = vpack.c.b16 %v369, %v368
      %v417 = vpack.c.b16 %v371, %v370
      %v418 = vpack.c.b16 %v373, %v372
      %v419 = vpack.c.b16 %v375, %v374
      %v420 = vpack.c.b16 %v377, %v376
      %v421 = vpack.c.b16 %v379, %v378
      %v422 = vpack.c.b16 %v381, %v380
      %v423 = vpack.c.b16 %v383, %v382
      %v424 = vpack.c.b16 %v385, %v384
      %v425 = vpack.c.b16 %v387, %v386
      %v426 = vpack.c.b16 %v389, %v388
      %v427 = vpack.c.b16 %v391, %v390
      %v428 = vpack.c.b16 %v393, %v392
      %v429 = vpack.c.b16 %v395, %v394
      %v430 = vpack.c.b16 %v397, %v396
      %v431 = vpack.c.b16 %v399, %v398
      %v432 = vpack.c.b16 %v401, %v400
      %v433 = vpack.c.b16 %v403, %v402
      %v434 = vpack.c.b16 %v405, %v404
      %v435 = vpack.c.b16 %v407, %v406
      %v436 = vpack.c.b16 %v409, %v408
      %v437 = vpack.c.b16 %v411, %v410
      %v438 = vpack.c.b16 %v413, %v412
      %v439 = vpack.c.b16 %v415, %v414
      %464 = vmatprep.subr.bf16.mxu0 0
      %465 = vmatpush1.bf16.msra.mxu0 %v423
      %466 = vmatprep.subr.bf16.mxu0 0
      %467 = vmatpush1.bf16.msra.mxu0 %v422
      %468 = vmatprep.subr.bf16.mxu0 0
      %469 = vmatpush1.bf16.msra.mxu0 %v421
      %470 = vmatprep.subr.bf16.mxu0 0
      %471 = vmatpush1.bf16.msra.mxu0 %v420
      %472 = vmatprep.subr.bf16.mxu0 0
      %473 = vmatpush1.bf16.msra.mxu0 %v419
      %474 = vmatprep.subr.bf16.mxu0 0
      %475 = vmatpush1.bf16.msra.mxu0 %v418
      %476 = vmatprep.subr.bf16.mxu0 0
      %477 = vmatpush1.bf16.msra.mxu0 %v417
      %478 = vmatprep.subr.bf16.mxu0 0
      %479 = vmatpush1.bf16.msra.mxu0 %v416
      %480 = vmatprep.subr.bf16.mxu0 0
      %481 = vmatpush2.bf16.msra.mxu0 %v431
      %482 = vmatprep.subr.bf16.mxu0 0
      %483 = vmatpush2.bf16.msra.mxu0 %v430
      %484 = vmatprep.subr.bf16.mxu0 0
      %485 = vmatpush2.bf16.msra.mxu0 %v429
      %486 = vmatprep.subr.bf16.mxu0 0
      %487 = vmatpush2.bf16.msra.mxu0 %v428
      %488 = vmatprep.subr.bf16.mxu0 0
      %489 = vmatpush2.bf16.msra.mxu0 %v427
      %490 = vmatprep.subr.bf16.mxu0 0
      %491 = vmatpush2.bf16.msra.mxu0 %v426
      %492 = vmatprep.subr.bf16.mxu0 0
      %493 = vmatpush2.bf16.msra.mxu0 %v425
      %494 = vmatprep.subr.bf16.mxu0 0
      %495 = vmatpush2.bf16.msra.mxu0 %v424
      %496 = vmatprep.mubr.bf16.mxu0 %v309
      %497 = vmatmul.mubr.bf16.gmra.mxu0 %v308
      %v498 = vpop.f32.mrf.mxu0
      %v499 = vadd.f32 %v290, %v498
      %v500 = vpop.f32.mrf.mxu0
      %v501 = vpop.f32.mrf.mxu0
      %v502 = vadd.f32 %v291, %v501
      %v503 = vpop.f32.mrf.mxu0
      %504 = vmatprep.mubr.bf16.mxu0 %v312
      %505 = vmatmul.mubr.bf16.gmra.mxu0 %v311
      %v506 = vpop.f32.mrf.mxu0
      %v507 = vadd.f32 %v292, %v506
      %v508 = vpop.f32.mrf.mxu0
      %v509 = vpop.f32.mrf.mxu0
      %v510 = vpop.f32.mrf.mxu0
      %511 = vdwg.mxu0
      %512 = vmatprep.subr.bf16.mxu0 0
      %513 = vmatpush1.bf16.msra.mxu0 %v439
      %514 = vmatprep.subr.bf16.mxu0 0
      %515 = vmatpush1.bf16.msra.mxu0 %v438
      %516 = vmatprep.subr.bf16.mxu0 0
      %517 = vmatpush1.bf16.msra.mxu0 %v437
      %518 = vmatprep.subr.bf16.mxu0 0
      %519 = vmatpush1.bf16.msra.mxu0 %v436
      %520 = vmatprep.subr.bf16.mxu0 0
      %521 = vmatpush1.bf16.msra.mxu0 %v435
      %522 = vmatprep.subr.bf16.mxu0 0
      %523 = vmatpush1.bf16.msra.mxu0 %v434
      %524 = vmatprep.subr.bf16.mxu0 0
      %525 = vmatpush1.bf16.msra.mxu0 %v433
      %526 = vmatprep.subr.bf16.mxu0 0
      %527 = vmatpush1.bf16.msra.mxu0 %v432
      %528 = vmatprep.subr.bf16.mxu0 0
      %529 = vmatpush2.bf16.msra.mxu0 0
      %530 = vmatprep.subr.bf16.mxu0 0
      %531 = vmatpush2.bf16.msra.mxu0 0
      %532 = vmatprep.subr.bf16.mxu0 0
      %533 = vmatpush2.bf16.msra.mxu0 0
      %534 = vmatprep.subr.bf16.mxu0 0
      %535 = vmatpush2.bf16.msra.mxu0 0
      %536 = vmatprep.subr.bf16.mxu0 0
      %537 = vmatpush2.bf16.msra.mxu0 0
      %538 = vmatprep.subr.bf16.mxu0 0
      %539 = vmatpush2.bf16.msra.mxu0 0
      %540 = vmatprep.subr.bf16.mxu0 0
      %541 = vmatpush2.bf16.msra.mxu0 0
      %542 = vmatprep.subr.bf16.mxu0 0
      %543 = vmatpush2.bf16.msra.mxu0 0
      %544 = vmatprep.mubr.bf16.mxu0 0
      %545 = vmatmul.mubr.bf16.gmra.mxu0 %v310
      %v546 = vpop.f32.mrf.mxu0
      %v547 = vadd.f32 %v499, %v546
      %v548 = vpop.f32.mrf.mxu0
      %v549 = vpop.f32.mrf.mxu0
      %v550 = vadd.f32 %v502, %v549
      %v551 = vpop.f32.mrf.mxu0
      %552 = vmatprep.mubr.bf16.mxu0 0
      %553 = vmatmul.mubr.bf16.gmra.mxu0 %v313
      %v554 = vpop.f32.mrf.mxu0
      %v555 = vadd.f32 %v507, %v554
      %v556 = vpop.f32.mrf.mxu0
      %v557 = vpop.f32.mrf.mxu0
      %v558 = vpop.f32.mrf.mxu0
      %559 = vdwg.mxu0
      %vm560 = vcmask 261120
      %561 = vst.msk [vmem:[%s233] sm:$0xff] %vm560, %v547
      %562 = vst.msk [vmem:[%s233 + $0x8] sm:$0xff] %vm560, %v550
      %563 = vst.msk [vmem:[%s233 + $0x10] sm:$0xff] %vm560, %v555
      %s564 = smul.u32 3, %s18
      %p565 = scmp.lt.s32.totalorder %s19, 1
      %s566 = scalar_select %p565, %s19, 1
      %p567 = scmp.lt.s32.totalorder %s564, 2
      %s568 = scalar_select %p567, %s564, 2
      %s569 = smul.addr %s566, 3
      %s570 = sadd.s32 %s568, %s569
      %s571 = smul.addr %s570, 8
      %s572 = scalar_lea.vmem %s3, %s571
      // Predicated region
      $region33: #{tpu_custom_call.1} parent=31 // pred_check
        %p573 = pneg %p121
      $region34: #{tpu_custom_call.1} parent=31 // pred_check_branch
        %575 = sbr.rel (%p573) target = $region36
      $region35: #{tpu_custom_call.1} parent=31 // pred_region
        %s576 = smul.u32 3, %s18
      $region36: #{tpu_custom_call.1} parent=31 // pred_fallthru
        _
    $region32: #{tpu_custom_call.1} parent=5 // pred_fallthru
      _
    %p577 = scmp.le.s32.totalorder 2, %s9
    // Predicated region
    $region37: #{tpu_custom_call.1} parent=5 // pred_check
      %p578 = pneg %p577
    $region38: #{tpu_custom_call.1} parent=5 // pred_check_branch
      %580 = sbr.rel (%p578) target = $region40
    $region39: #{tpu_custom_call.1} parent=5 // pred_region
      %s581 = ssub.s32 %s9, 2
      // Predicated region
      $region41: #{tpu_custom_call.1} parent=39 // pred_check
        %p582 = pneg %p127
      $region42: #{tpu_custom_call.1} parent=39 // pred_check_branch
        %584 = sbr.rel (%p582) target = $region44
      $region43: #{tpu_custom_call.1} parent=39 // pred_region
        %s585 = smul.u32 3, %s20
        %p586 = scmp.lt.s32.totalorder %s21, 1
        %s587 = scalar_select %p586, %s21, 1
        %p588 = scmp.lt.s32.totalorder %s585, 2
        %s589 = scalar_select %p588, %s585, 2
        %s590 = smul.addr %s587, 3
        %s591 = sadd.s32 %s589, %s590
        %s592 = smul.addr %s591, 8
        %s593 = scalar_lea.vmem %s3, %s592
      $region44: #{tpu_custom_call.1} parent=39 // pred_fallthru
        _
    $region40: #{tpu_custom_call.1} parent=5 // pred_fallthru
      _
  $region6: #{tpu_custom_call.1} parent=0 // loop_footer
    %s13 = sadd.s32 1, %s9
  $region7: #{tpu_custom_call.1} parent=0 // loop_footer_branch
    %8 = sbr.rel target = $region3
  $region8: #{tpu_custom_call.1} parent=0 // loop_exit
    _

</llo_original>
